<compile_context>
chip_gen: v6e
topology: v6e:2x2x1
jax: 0.10.0
libtpu: 0.0.40
codegen_flags: <defaults>
</compile_context>

<pallas_src>
import jax
import jax.numpy as jnp
from jax.experimental import pallas as pl
from jax.experimental.pallas import tpu as pltpu

EPS = 1e-5


# --------------------------------------------------------------------------
# sizing helpers
# --------------------------------------------------------------------------
def _vmem_limit_bytes():
    """Generation-aware VMEM limit (v7x has 64 MiB physical; v5e/v6e 128 MiB)."""
    cap = None
    try:
        info = pltpu.get_tpu_info()
        cap = getattr(info, "vmem_capacity_bytes", None)
    except Exception:
        cap = None
    if not cap:
        cap = 64 * 1024 * 1024  # conservative (v7x-sized) default
    return int(min(cap * 3 // 4, 100 * 1024 * 1024))


def _sublane_quantum(dtype):
    """Sublane packing quantum: 8 for f32, 16 for bf16, 32 for int8/fp8."""
    itemsize = jnp.dtype(dtype).itemsize
    return max(8, 32 // max(itemsize, 1))


def _pick_block(dim, target, quantum):
    """Largest multiple of `quantum` that divides `dim` and is <= target, else `dim`."""
    if dim <= target:
        return dim
    t = (min(target, dim) // quantum) * quantum
    while t >= quantum:
        if dim % t == 0:
            return t
        t -= quantum
    return dim  # full extent (always legal for a BlockSpec dim)


def _pick_channel_block(N, C, L, usable_bytes):
    """Channel-strip width for the fused path, or None if no strip fits VMEM.

    A legal c_blk is a multiple of 8 that divides C, or C itself (full dim).
    Footprint estimate per grid step: double-buffered in + out blocks plus the
    f32 temporaries inside the kernel -> ~8x the f32 block bytes.
    """
    row_bytes = N * L * 4  # f32 working bytes per channel
    max_c = usable_bytes // (8 * row_bytes)
    if max_c < 1:
        return None
    # Prefer >=2 strips so both v7x TensorCores get work (v5e/v6e unaffected).
    target = C // 2 if C >= 16 else C
    target = min(target, int(max_c))
    t = (target // 8) * 8
    while t >= 8:
        if C % t == 0:
            return t
        t -= 8
    if C <= max_c:
        return C
    return None


# --------------------------------------------------------------------------
# fused single-pass kernel (primary path)
# --------------------------------------------------------------------------
def _fused_kernel(x_ref, g_ref, b_ref, o_ref):
    # x_ref: (N, c_blk, L) — full batch, one channel strip, full length.
    # g_ref/b_ref: (c_blk, 1) f32.
    x = x_ref[...].astype(jnp.float32)
    cnt = jnp.float32(x.shape[0] * x.shape[2])

    # per-channel mean over (N, L)
    s1 = jnp.sum(jnp.sum(x, axis=0), axis=-1, keepdims=True)      # (c_blk, 1)
    mean = s1 / cnt

    # centered (numerically stable) biased variance
    xc = x - mean[None, :, :]
    s2 = jnp.sum(jnp.sum(xc * xc, axis=0), axis=-1, keepdims=True)
    var = s2 / cnt

    inv_std = jax.lax.rsqrt(var + EPS)                              # EUP slot
    scale = g_ref[...].astype(jnp.float32) * inv_std                # (c_blk, 1)
    bias = b_ref[...].astype(jnp.float32)

    y = xc * scale[None, :, :] + bias[None, :, :]
    o_ref[...] = y.astype(o_ref.dtype)


# --------------------------------------------------------------------------
# two-pass fallback kernels
# --------------------------------------------------------------------------
def _stats_kernel(x_ref, out_ref, acc_ref):
    # x_ref: (n_blk, m_blk). acc_ref: (8, m_blk) f32 VMEM scratch (rows 0/1
    # used). out_ref (2, m_blk) written once at the last reduction step.
    n_idx = pl.program_id(1)

    x = x_ref[...].astype(jnp.float32)
    col_sum = jnp.sum(x, axis=0, keepdims=True)   # (1, m_blk)
    col_sq = jnp.sum(x * x, axis=0, keepdims=True)

    @pl.when(n_idx == 0)
    def _init():
        acc_ref[0:1, :] = col_sum
        acc_ref[1:2, :] = col_sq

    @pl.when(n_idx > 0)
    def _acc():
        acc_ref[0:1, :] += col_sum
        acc_ref[1:2, :] += col_sq

    @pl.when(n_idx == pl.num_programs(1) - 1)
    def _finalize():
        out_ref[0:1, :] = acc_ref[0:1, :]
        out_ref[1:2, :] = acc_ref[1:2, :]


def _apply_kernel(x_ref, scale_ref, bias_ref, o_ref):
    # Single fused multiply-add per element; scale/bias folded per column.
    y = x_ref[...].astype(jnp.float32) * scale_ref[...] + bias_ref[...]
    o_ref[...] = y.astype(o_ref.dtype)


def _two_pass(x, gamma, beta, n_block, m_block, vmem_limit):
    N, C, L = x.shape
    M = C * L
    x2 = x.reshape(N, M)  # free contiguous reshape, no HBM transpose

    n_blk = _pick_block(N, n_block, _sublane_quantum(x.dtype))
    # cap m_blk so the (only) parallel axis of pass 1 has >= 2 blocks (v7x)
    m_target = min(m_block, M // 2) if M >= 256 else m_block
    m_blk = _pick_block(M, m_target, 128)
    num_n = N // n_blk
    num_m = M // m_blk

    # ---- pass 1: per-column sum / sum-of-squares (f32 accumulation) ----
    stats = pl.pallas_call(
        _stats_kernel,
        out_shape=jax.ShapeDtypeStruct((2, M), jnp.float32),
        grid=(num_m, num_n),  # reduction (batch-tile) axis last
        in_specs=[pl.BlockSpec((n_blk, m_blk), lambda m, n: (n, m))],
        out_specs=pl.BlockSpec((2, m_blk), lambda m, n: (0, m)),
        scratch_shapes=[pltpu.VMEM((8, m_blk), jnp.float32)],
        compiler_params=pltpu.CompilerParams(
            dimension_semantics=("parallel", "arbitrary"),
            vmem_limit_bytes=vmem_limit,
        ),
    )(x2)

    # ---- fold per-channel scale/bias once (O(C*L) XLA work) ----
    # NOTE: E[x^2]-E[x]^2 is cancellation-prone for |mean| >> std; the fused
    # path (used whenever a full-N strip fits VMEM) is centered instead.
    count = jnp.float32(N * L)
    sum_c = stats[0].reshape(C, L).sum(axis=1)
    sq_c = stats[1].reshape(C, L).sum(axis=1)
    mean = sum_c / count
    var = jnp.maximum(sq_c / count - mean * mean, 0.0)  # biased variance
    inv_std = jax.lax.rsqrt(var + EPS)
    scale = gamma.astype(jnp.float32) * inv_std          # (C,)
    bias = beta.astype(jnp.float32) - mean * scale       # (C,)
    scale_cols = jnp.repeat(scale, L).reshape(1, M)
    bias_cols = jnp.repeat(bias, L).reshape(1, M)

    # ---- pass 2: y = x * scale + bias (m outer so scale/bias blocks keep a
    # constant index over the inner n axis and are not re-DMA'd) ----
    out2 = pl.pallas_call(
        _apply_kernel,
        out_shape=jax.ShapeDtypeStruct((N, M), x.dtype),
        grid=(num_m, num_n),
        in_specs=[
            pl.BlockSpec((n_blk, m_blk), lambda m, n: (n, m)),
            pl.BlockSpec((1, m_blk), lambda m, n: (0, m)),
            pl.BlockSpec((1, m_blk), lambda m, n: (0, m)),
        ],
        out_specs=pl.BlockSpec((n_blk, m_blk), lambda m, n: (n, m)),
        compiler_params=pltpu.CompilerParams(
            dimension_semantics=("parallel", "parallel"),
            vmem_limit_bytes=vmem_limit,
        ),
    )(x2, scale_cols, bias_cols)

    return out2.reshape(N, C, L)


# --------------------------------------------------------------------------
# public wrapper
# --------------------------------------------------------------------------
def custom_norm_batch(x, gamma, beta, *, n_block=256, m_block=4096,
                      force_two_pass=False):
    """BatchNorm1d forward (training-mode batch statistics).

    Args:
      x:     (N, C, L) array (PyTorch NCL layout).
      gamma: (C,) scale.
      beta:  (C,) shift.
    Returns:
      (N, C, L) normalized output, same dtype as x.
    """
    N, C, L = x.shape
    vmem_limit = _vmem_limit_bytes()
    usable = vmem_limit - (2 << 20)  # headroom for compiler-internal scratch

    if not force_two_pass:
        c_blk = _pick_channel_block(N, C, L, usable)
        if c_blk is not None:
            # ---- fused single-pass: read x once, write y once ----
            num_c = C // c_blk
            gamma2 = gamma.reshape(C, 1).astype(jnp.float32)
            beta2 = beta.reshape(C, 1).astype(jnp.float32)
            return pl.pallas_call(
                _fused_kernel,
                out_shape=jax.ShapeDtypeStruct((N, C, L), x.dtype),
                grid=(num_c,),
                in_specs=[
                    pl.BlockSpec((N, c_blk, L), lambda c: (0, c, 0)),
                    pl.BlockSpec((c_blk, 1), lambda c: (c, 0)),
                    pl.BlockSpec((c_blk, 1), lambda c: (c, 0)),
                ],
                out_specs=pl.BlockSpec((N, c_blk, L), lambda c: (0, c, 0)),
                compiler_params=pltpu.CompilerParams(
                    dimension_semantics=("parallel",),
                    vmem_limit_bytes=vmem_limit,
                ),
            )(x, gamma2, beta2)

    # ---- fallback: full-N strip does not fit VMEM -> two streaming passes ----
    return _two_pass(x, gamma, beta, n_block, m_block, vmem_limit)


def reference_batchnorm1d(x, gamma, beta):
    # Pure-JAX reference of PyTorch BatchNorm1d training-mode forward.
    xf = x.astype(jnp.float32)
    mean = jnp.mean(xf, axis=(0, 2), keepdims=True)
    var = jnp.mean((xf - mean) ** 2, axis=(0, 2), keepdims=True)
    y = (xf - mean) / jnp.sqrt(var + EPS)
    return (y * gamma.reshape(1, -1, 1) + beta.reshape(1, -1, 1)).astype(x.dtype)


if __name__ == "__main__":
    key = jax.random.PRNGKey(0)
    kx, kg, kb = jax.random.split(key, 3)

    N, C, L = 16, 32, 64  # num_features = C = 32
    # Non-zero mean / non-unit std so the centering + variance paths are
    # actually exercised numerically.
    x = 2.0 * jax.random.normal(kx, (N, C, L), dtype=jnp.float32) + 3.0
    gamma = 1.0 + 0.1 * jax.random.normal(kg, (C,), dtype=jnp.float32)
    beta = 0.1 * jax.random.normal(kb, (C,), dtype=jnp.float32)

    ref = reference_batchnorm1d(x, gamma, beta)

    # Primary fused single-pass path (channel-strip grid of 2 at this size).
    out = jax.block_until_ready(custom_norm_batch(x, gamma, beta))
    assert out.shape == (N, C, L)
    assert jnp.max(jnp.abs(out - ref)) < 1e-4, "fused path mismatch vs reference"

    # Two-pass fallback path, forced with small tiles so the multi-tile
    # accumulation (stats grid (4, 2)) and apply grid are also exercised.
    out_fb = jax.block_until_ready(
        custom_norm_batch(x, gamma, beta, n_block=8, m_block=512,
                          force_two_pass=True))
    assert jnp.max(jnp.abs(out_fb - ref)) < 1e-4, "fallback path mismatch vs reference"

    print("KERNEL_OK")
</pallas_src>

<mosaic_0001>
module attributes {stable_mosaic.version = 11 : i64} {
  func.func @_fused_kernel(%arg0: i32, %arg1: memref<16x16x64xf32, #tpu.memory_space<vmem>>, %arg2: memref<16x1xf32, #tpu.memory_space<vmem>>, %arg3: memref<16x1xf32, #tpu.memory_space<vmem>>, %arg4: memref<16x16x64xf32, #tpu.memory_space<vmem>>) attributes {dimension_semantics = [#tpu.dimension_semantics<parallel>], iteration_bounds = array<i64: 2>, scalar_prefetch = 0 : i64, scratch_operands = 0 : i64, tpu.core_type = #tpu.core_type<tc>, window_params = [{transform_indices = @transform_0, window_bounds = array<i64: 16, 16, 64>}, {transform_indices = @transform_1, window_bounds = array<i64: 16, 1>}, {transform_indices = @transform_2, window_bounds = array<i64: 16, 1>}, {transform_indices = @transform_3, window_bounds = array<i64: 16, 16, 64>}]} {
    %c0 = arith.constant 0 : index
    %c0_0 = arith.constant 0 : index
    %c0_1 = arith.constant 0 : index
    %0 = vector.load %arg1[%c0, %c0_0, %c0_1] : memref<16x16x64xf32, #tpu.memory_space<vmem>>, vector<16x16x64xf32>
    %cst = arith.constant dense<0.000000e+00> : vector<16x64xf32>
    %1 = vector.multi_reduction <add>, %0, %cst [0] : vector<16x16x64xf32> to vector<16x64xf32>
    %cst_2 = arith.constant dense<0.000000e+00> : vector<16xf32>
    %2 = vector.multi_reduction <add>, %1, %cst_2 [1] : vector<16x64xf32> to vector<16xf32>
    %3 = vector.shape_cast %2 : vector<16xf32> to vector<16x1xf32>
    %cst_3 = arith.constant 1.024000e+03 : f32
    %4 = vector.broadcast %cst_3 : f32 to vector<16x1xf32>
    %5 = arith.divf %3, %4 : vector<16x1xf32>
    %6 = vector.shape_cast %5 : vector<16x1xf32> to vector<1x16x1xf32>
    %7 = vector.broadcast %6 : vector<1x16x1xf32> to vector<16x16x64xf32>
    %8 = arith.subf %0, %7 : vector<16x16x64xf32>
    %9 = arith.mulf %8, %8 : vector<16x16x64xf32>
    %cst_4 = arith.constant dense<0.000000e+00> : vector<16x64xf32>
    %10 = vector.multi_reduction <add>, %9, %cst_4 [0] : vector<16x16x64xf32> to vector<16x64xf32>
    %cst_5 = arith.constant dense<0.000000e+00> : vector<16xf32>
    %11 = vector.multi_reduction <add>, %10, %cst_5 [1] : vector<16x64xf32> to vector<16xf32>
    %12 = vector.shape_cast %11 : vector<16xf32> to vector<16x1xf32>
    %cst_6 = arith.constant 1.024000e+03 : f32
    %13 = vector.broadcast %cst_6 : f32 to vector<16x1xf32>
    %14 = arith.divf %12, %13 : vector<16x1xf32>
    %cst_7 = arith.constant 9.99999974E-6 : f32
    %15 = vector.broadcast %cst_7 : f32 to vector<16x1xf32>
    %16 = arith.addf %14, %15 : vector<16x1xf32>
    %17 = math.rsqrt %16 : vector<16x1xf32>
    %c0_8 = arith.constant 0 : index
    %c0_9 = arith.constant 0 : index
    %18 = vector.load %arg2[%c0_8, %c0_9] : memref<16x1xf32, #tpu.memory_space<vmem>>, vector<16x1xf32>
    %19 = arith.mulf %18, %17 : vector<16x1xf32>
    %c0_10 = arith.constant 0 : index
    %c0_11 = arith.constant 0 : index
    %20 = vector.load %arg3[%c0_10, %c0_11] : memref<16x1xf32, #tpu.memory_space<vmem>>, vector<16x1xf32>
    %21 = vector.shape_cast %19 : vector<16x1xf32> to vector<1x16x1xf32>
    %22 = vector.broadcast %21 : vector<1x16x1xf32> to vector<16x16x64xf32>
    %23 = arith.mulf %8, %22 : vector<16x16x64xf32>
    %24 = vector.shape_cast %20 : vector<16x1xf32> to vector<1x16x1xf32>
    %25 = vector.broadcast %24 : vector<1x16x1xf32> to vector<16x16x64xf32>
    %26 = arith.addf %23, %25 : vector<16x16x64xf32>
    %c0_12 = arith.constant 0 : index
    %c0_13 = arith.constant 0 : index
    %c0_14 = arith.constant 0 : index
    %27 = vector.load %arg4[%c0_12, %c0_13, %c0_14] : memref<16x16x64xf32, #tpu.memory_space<vmem>>, vector<16x16x64xf32>
    tpu.vector_store %arg4[%c0_12, %c0_13, %c0_14], %26 {strides = array<i32>} : memref<16x16x64xf32, #tpu.memory_space<vmem>>, vector<16x16x64xf32>,
    return
  }
  func.func @transform_0(%arg0: i32) -> (i32, i32, i32) {
    %c0_i32 = arith.constant 0 : i32
    %c0_i32_0 = arith.constant 0 : i32
    %c0_i32_1 = arith.constant 0 : i32
    return %c0_i32, %arg0, %c0_i32_0 : i32, i32, i32
  }
  func.func @transform_1(%arg0: i32) -> (i32, i32) {
    %c0_i32 = arith.constant 0 : i32
    %c0_i32_0 = arith.constant 0 : i32
    return %arg0, %c0_i32 : i32, i32
  }
  func.func @transform_2(%arg0: i32) -> (i32, i32) {
    %c0_i32 = arith.constant 0 : i32
    %c0_i32_0 = arith.constant 0 : i32
    return %arg0, %c0_i32 : i32, i32
  }
  func.func @transform_3(%arg0: i32) -> (i32, i32, i32) {
    %c0_i32 = arith.constant 0 : i32
    %c0_i32_0 = arith.constant 0 : i32
    %c0_i32_1 = arith.constant 0 : i32
    return %c0_i32, %arg0, %c0_i32_0 : i32, i32, i32
  }
}

</mosaic_0001>

<llo_original>
// kernel: tpu_custom_call.1
$region0: #{tpu_custom_call.1}
  #allocation0 [shape = 'u32[]', space=smem, size = 0x4, offset = 0x4, fixed_abs, tag = 'smem constant byte address 0x4 - core index']
  #allocation1 [shape = 'u32[144,128]{1,0:T(1,128)}', space=vmem, size = 0x12000, scoped, tag = 'internal scratch']
  #allocation6 [shape = 's32[]', space=sflag, size = 0x4, offset = 0, fixed_abs, tag = 'sflag constant byte address 0x0 - dummy sync flag']
  #allocation8 [shape = 's32[]', space=sflag, size = 0x4, offset = 0, fixed_abs, tag = 'sflag constant byte address 0x0 - dummy sync flag']
  %s0 = inlined_call_operand.hbm [shape: f32[16,32,64], index: 0, kind: input, shape index: {}]
  %s1 = inlined_call_operand.vmem [shape: f32[32,1], index: 1, kind: input, shape index: {}]
  %s2 = inlined_call_operand.vmem [shape: f32[32,1], index: 2, kind: input, shape index: {}]
  %s3 = inlined_call_operand.hbm [shape: f32[16,32,64], index: 3, kind: output, shape index: {}]
  %s4 = sld [smem:[#allocation0]]
  $region49: #{tpu_custom_call.1} parent=0
    _
  %s6 = ssub.s32 1, %s4
  %s7 = scalar_select 0, %s6, %s4
  $region1: #{tpu_custom_call.1} parent=0
    #allocation2 [shape = 'u8[262144]{0}', space=vmem, size = 0x40000, scoped, tag = 'input window, operand 0']
    #allocation3 [shape = 's32[2]{0}', space=sflag, size = 0x8, scoped, tag = 'scoped memory for tpu_custom_call.1']
    #allocation4 [shape = 's32[2]{0}', space=sflag, size = 0x8, scoped, tag = 'scoped memory for tpu_custom_call.1']
    #allocation5 [shape = 'u8[262144]{0}', space=vmem, size = 0x40000, scoped, tag = 'output window, operand 0']
    %8 = vsyncpa [#allocation3], 0
    %s9 = scalar_lea.sflag [#allocation3], 1
    %10 = vsyncpa %s9, 0
    %11 = vsyncpa [#allocation4], 0
    %s12 = scalar_lea.sflag [#allocation4], 1
    %13 = vsyncpa %s12, 0
    loop: start=0, step=1, limit=4
    $region2: #{tpu_custom_call.1} parent=1 // loop_pre_header
      _
    $region3: #{tpu_custom_call.1} parent=1 // loop_header
      %s15 = sphi 0, %s19
      %p16 = scmp.ge.s32.totalorder %s15, 4
      %s25 = sphi 0, %s27
      %s28 = sphi 0, %s25
      %s29 = sphi 0, %s28
      %s45 = sphi 0, %s29
      %s51 = sphi 0, %s53
      %s54 = sphi 0, %s51
      %s55 = sphi 0, %s54
      %s71 = sphi 0, %s55
      %s77 = sphi 0, %s79
      %s80 = sphi 0, %s77
      %s81 = sphi 0, %s80
      %s97 = sphi 0, %s81
      %s103 = sphi 0, %s105
      %s106 = sphi 0, %s103
      %s107 = sphi 0, %s106
      %s123 = sphi 0, %s107
    $region4: #{tpu_custom_call.1} parent=1 // loop_header_branch
      %18 = sbr.rel (%p16) target = $region8
    $region5: #{tpu_custom_call.1} parent=1 // loop_body
      %s20 = ssub.s32 %s15, 1
      %s21 = ssub.s32 %s15, 2
      %s22 = sadd.s32 %s15, 1
      %s23 = ssub.s32 %s15, %s22
      %p24 = scmp.eq.s32.totalorder %s23, 0
      %s26 = sadd.s32 %s25, 1
      %s27 = scalar_select %p24, %s25, %s26
      %p30 = pneg %p24
      %p31 = scmp.eq.s32.totalorder %s15, 1
      %p32 = por %p30, %p31
      %p33 = scmp.ne.s32.totalorder %s25, %s28
      %p34 = scmp.eq.s32.totalorder %s15, 0
      %p35 = por %p33, %p34
      %p36 = scmp.ne.s32.totalorder %s25, %s28
      %p37 = scmp.eq.s32.totalorder %s20, 1
      %p38 = por %p36, %p37
      %p39 = scmp.ne.s32.totalorder %s28, %s29
      %p40 = scmp.eq.s32.totalorder %s20, 0
      %p41 = por %p39, %p40
      %p42 = scmp.ne.s32.totalorder %s28, %s29
      %p43 = scmp.eq.s32.totalorder %s21, 1
      %p44 = por %p42, %p43
      %p46 = scmp.ne.s32.totalorder %s29, %s45
      %p47 = scmp.eq.s32.totalorder %s21, 0
      %p48 = por %p46, %p47
      %s49 = ssub.s32 %s15, %s22
      %p50 = scmp.eq.s32.totalorder %s49, 0
      %s52 = sadd.s32 %s51, 1
      %s53 = scalar_select %p50, %s51, %s52
      %p56 = pneg %p50
      %p57 = scmp.eq.s32.totalorder %s15, 1
      %p58 = por %p56, %p57
      %p59 = scmp.ne.s32.totalorder %s51, %s54
      %p60 = scmp.eq.s32.totalorder %s15, 0
      %p61 = por %p59, %p60
      %p62 = scmp.ne.s32.totalorder %s51, %s54
      %p63 = scmp.eq.s32.totalorder %s20, 1
      %p64 = por %p62, %p63
      %p65 = scmp.ne.s32.totalorder %s54, %s55
      %p66 = scmp.eq.s32.totalorder %s20, 0
      %p67 = por %p65, %p66
      %p68 = scmp.ne.s32.totalorder %s54, %s55
      %p69 = scmp.eq.s32.totalorder %s21, 1
      %p70 = por %p68, %p69
      %p72 = scmp.ne.s32.totalorder %s55, %s71
      %p73 = scmp.eq.s32.totalorder %s21, 0
      %p74 = por %p72, %p73
      %s75 = ssub.s32 %s15, %s22
      %p76 = scmp.eq.s32.totalorder %s75, 0
      %s78 = sadd.s32 %s77, 1
      %s79 = scalar_select %p76, %s77, %s78
      %p82 = pneg %p76
      %p83 = scmp.eq.s32.totalorder %s15, 1
      %p84 = por %p82, %p83
      %p85 = scmp.ne.s32.totalorder %s77, %s80
      %p86 = scmp.eq.s32.totalorder %s15, 0
      %p87 = por %p85, %p86
      %p88 = scmp.ne.s32.totalorder %s77, %s80
      %p89 = scmp.eq.s32.totalorder %s20, 1
      %p90 = por %p88, %p89
      %p91 = scmp.ne.s32.totalorder %s80, %s81
      %p92 = scmp.eq.s32.totalorder %s20, 0
      %p93 = por %p91, %p92
      %p94 = scmp.ne.s32.totalorder %s80, %s81
      %p95 = scmp.eq.s32.totalorder %s21, 1
      %p96 = por %p94, %p95
      %p98 = scmp.ne.s32.totalorder %s81, %s97
      %p99 = scmp.eq.s32.totalorder %s21, 0
      %p100 = por %p98, %p99
      %s101 = ssub.s32 %s15, %s22
      %p102 = scmp.eq.s32.totalorder %s101, 0
      %s104 = sadd.s32 %s103, 1
      %s105 = scalar_select %p102, %s103, %s104
      %p108 = pneg %p102
      %p109 = scmp.eq.s32.totalorder %s15, 1
      %p110 = por %p108, %p109
      %p111 = scmp.ne.s32.totalorder %s103, %s106
      %p112 = scmp.eq.s32.totalorder %s15, 0
      %p113 = por %p111, %p112
      %p114 = scmp.ne.s32.totalorder %s103, %s106
      %p115 = scmp.eq.s32.totalorder %s20, 1
      %p116 = por %p114, %p115
      %p117 = scmp.ne.s32.totalorder %s106, %s107
      %p118 = scmp.eq.s32.totalorder %s20, 0
      %p119 = por %p117, %p118
      %p120 = scmp.ne.s32.totalorder %s106, %s107
      %p121 = scmp.eq.s32.totalorder %s21, 1
      %p122 = por %p120, %p121
      %p124 = scmp.ne.s32.totalorder %s107, %s123
      %p125 = scmp.eq.s32.totalorder %s21, 0
      %p126 = por %p124, %p125
      %p127 = scmp.le.s32.totalorder 1, %s15
      %p128 = scmp.lt.s32.totalorder %s15, 3
      %p129 = pnand %p127, %p128
      %p130 = pneg %p129
      // Predicated region
      $region9: #{tpu_custom_call.1} parent=5 // pred_check
        _
      $region10: #{tpu_custom_call.1} parent=5 // pred_check_branch
        %132 = sbr.rel (%p129) target = $region12
      $region11: #{tpu_custom_call.1} parent=5 // pred_region
        %s133 = ssub.s32 %s15, 1
      $region12: #{tpu_custom_call.1} parent=5 // pred_fallthru
        _
      %p134 = scmp.lt.s32.totalorder %s15, 2
      // Predicated region
      $region13: #{tpu_custom_call.1} parent=5 // pred_check
        %p135 = pneg %p134
      $region14: #{tpu_custom_call.1} parent=5 // pred_check_branch
        %137 = sbr.rel (%p135) target = $region16
      $region15: #{tpu_custom_call.1} parent=5 // pred_region
        // Predicated region
        $region17: #{tpu_custom_call.1} parent=15 // pred_check
          %p138 = pneg %p35
        $region18: #{tpu_custom_call.1} parent=15 // pred_check_branch
          %140 = sbr.rel (%p138) target = $region20
        $region19: #{tpu_custom_call.1} parent=15 // pred_region
          #allocation7 [shape = 'u32[6]{0}', space=smem, size = 0x18, scoped, tag = 'DMA stride descriptor']
          %s141 = sand.u32 %s25, 1
          %s142 = scalar_lea.sflag [#allocation3], %s141
          %s143 = sand.u32 %s25, 1
          %s144 = smul.addr %s143, 256
          %s145 = scalar_lea.vmem [#allocation2], %s144
          %s146 = smul.u32 2, %s15
          %s148 = ssub.s32 4096, 4096
          %149 = vsyncadd %s142, %s148
          %s150 = smul.addr %s146, 128
          %s151 = scalar_lea.hbm %s0, %s150
          %s153 = sshll.u32 1, 14
          %s154 = sxor.u32 4294967295, %s153
          %s156 = sld [smem:[#allocation0]]
          %s157 = sadd.s32 2, %s156
          %s159 = sshll.u32 7, 26
          %s160 = sxor.u32 4294967295, %s159
          %s161 = sand.u32 0, %s160
          %s162 = sshll.u32 %s157, 26
          %s163 = sor.u32 %s161, %s162
          %s164 = sshll.u32 %s145, 4
          %s165 = int_to_ptr.vmem [resolvable:$true] %s164
          %171 = sst [smem:[#allocation7]] 512
          %s172 = scalar_lea.smem [#allocation7], 1
          %173 = sst [smem:[%s172]] 256
          %s174 = scalar_lea.smem [#allocation7], 2
          %175 = sst [smem:[%s174]] 2
          %s176 = scalar_lea.smem [#allocation7], 3
          %177 = sst [smem:[%s176]] 128
          %s178 = scalar_lea.smem [#allocation7], 4
          %179 = sst [smem:[%s178]] 128
          %s180 = scalar_lea.smem [#allocation7], 5
          %181 = sst [smem:[%s180]] 8
          %183 = dma.general %s151, 4096, %s165, %s142, 131072, [#allocation7], %s163, 0
        $region20: #{tpu_custom_call.1} parent=15 // pred_fallthru
          _
        // Predicated region
        $region21: #{tpu_custom_call.1} parent=15 // pred_check
          %p184 = pneg %p61
        $region22: #{tpu_custom_call.1} parent=15 // pred_check_branch
          %186 = sbr.rel (%p184) target = $region24
        $region23: #{tpu_custom_call.1} parent=15 // pred_region
          %s187 = smul.u32 2, %s15
          %p188 = scmp.lt.s32.totalorder %s187, 3
          %s189 = scalar_select %p188, %s187, 3
          %s190 = smul.addr %s189, 8
          %s191 = scalar_lea.vmem %s1, %s190
          %s192 = smul.u32 2, %s15
        $region24: #{tpu_custom_call.1} parent=15 // pred_fallthru
          _
        // Predicated region
        $region25: #{tpu_custom_call.1} parent=15 // pred_check
          %p193 = pneg %p87
        $region26: #{tpu_custom_call.1} parent=15 // pred_check_branch
          %195 = sbr.rel (%p193) target = $region28
        $region27: #{tpu_custom_call.1} parent=15 // pred_region
          %s196 = smul.u32 2, %s15
          %p197 = scmp.lt.s32.totalorder %s196, 3
          %s198 = scalar_select %p197, %s196, 3
          %s199 = smul.addr %s198, 8
          %s200 = scalar_lea.vmem %s2, %s199
          %s201 = smul.u32 2, %s15
        $region28: #{tpu_custom_call.1} parent=15 // pred_fallthru
          _
      $region16: #{tpu_custom_call.1} parent=5 // pred_fallthru
        _
      %p202 = scmp.le.s32.totalorder 1, %s15
      %p203 = scmp.lt.s32.totalorder %s15, 3
      %p204 = pnand %p202, %p203
      %p205 = pneg %p204
      // Predicated region
      $region29: #{tpu_custom_call.1} parent=5 // pred_check
        _
      $region30: #{tpu_custom_call.1} parent=5 // pred_check_branch
        %207 = sbr.rel (%p204) target = $region32
      $region31: #{tpu_custom_call.1} parent=5 // pred_region
        %s208 = ssub.s32 %s15, 1
        %s209 = sand.u32 %s28, 1
        %s210 = scalar_lea.sflag [#allocation3], %s209
        %s211 = sand.u32 %s28, 1
        %s212 = smul.addr %s211, 256
        %s213 = scalar_lea.vmem [#allocation2], %s212
        // Predicated region
        $region33: #{tpu_custom_call.1} parent=31 // pred_check
          %p214 = pneg %p41
        $region34: #{tpu_custom_call.1} parent=31 // pred_check_branch
          %216 = sbr.rel (%p214) target = $region36
        $region35: #{tpu_custom_call.1} parent=31 // pred_region
          %217 = dma.done %s210, 4096
        $region36: #{tpu_custom_call.1} parent=31 // pred_fallthru
          _
        %s218 = sand.u32 %s28, 1
        %s219 = scalar_lea.sflag [#allocation3], %s218
        %s220 = sand.u32 %s28, 1
        %s221 = smul.addr %s220, 256
        %s222 = scalar_lea.vmem [#allocation2], %s221
        %p223 = pneg %p41
        %p224 = pneg %p38
        %s225 = smul.u32 2, %s20
        %p226 = scmp.lt.s32.totalorder %s225, 3
        %s227 = scalar_select %p226, %s225, 3
        %s228 = smul.addr %s227, 8
        %s229 = scalar_lea.vmem %s1, %s228
        %p230 = pneg %p67
        %p231 = pneg %p64
        %s232 = smul.u32 2, %s20
        %p233 = scmp.lt.s32.totalorder %s232, 3
        %s234 = scalar_select %p233, %s232, 3
        %s235 = smul.addr %s234, 8
        %s236 = scalar_lea.vmem %s2, %s235
        %p237 = pneg %p93
        %p238 = pneg %p90
        %p239 = pneg %p119
        %p240 = pneg %p116
        %s241 = sand.u32 %s106, 1
        %s242 = scalar_lea.sflag [#allocation4], %s241
        %s243 = sand.u32 %s106, 1
        %s244 = smul.addr %s243, 256
        %s245 = scalar_lea.vmem [#allocation5], %s244
        %s246 = smul.u32 2, %s20
        %s247 = smul.u32 2, %s20
        %p248 = scmp.lt.s32.totalorder %s247, 3
        %s249 = scalar_select %p248, %s247, 3
        %s250 = smul.addr %s249, 8
        %s251 = scalar_lea.vmem %s1, %s250
        %s252 = smul.u32 2, %s20
        %s253 = smul.u32 2, %s20
        %p254 = scmp.lt.s32.totalorder %s253, 3
        %s255 = scalar_select %p254, %s253, 3
        %s256 = smul.addr %s255, 8
        %s257 = scalar_lea.vmem %s2, %s256
        %s258 = smul.u32 2, %s20
        %s259 = smul.u32 2, %s20
        %v260 = vld [vmem:[%s213] sm:$0xff]
        %v261 = vld [vmem:[%s213 + $0x8] sm:$0xff]
        %v262 = vld [vmem:[%s213 + $0x10] sm:$0xff]
        %v263 = vld [vmem:[%s213 + $0x18] sm:$0xff]
        %v264 = vld [vmem:[%s213 + $0x20] sm:$0xff]
        %v265 = vld [vmem:[%s213 + $0x28] sm:$0xff]
        %v266 = vld [vmem:[%s213 + $0x30] sm:$0xff]
        %v267 = vld [vmem:[%s213 + $0x38] sm:$0xff]
        %v268 = vld [vmem:[%s213 + $0x40] sm:$0xff]
        %v269 = vld [vmem:[%s213 + $0x48] sm:$0xff]
        %v270 = vld [vmem:[%s213 + $0x50] sm:$0xff]
        %v271 = vld [vmem:[%s213 + $0x58] sm:$0xff]
        %v272 = vld [vmem:[%s213 + $0x60] sm:$0xff]
        %v273 = vld [vmem:[%s213 + $0x68] sm:$0xff]
        %v274 = vld [vmem:[%s213 + $0x70] sm:$0xff]
        %v275 = vld [vmem:[%s213 + $0x78] sm:$0xff]
        %v276 = vld [vmem:[%s213 + $0x80] sm:$0xff]
        %v277 = vld [vmem:[%s213 + $0x88] sm:$0xff]
        %v278 = vld [vmem:[%s213 + $0x90] sm:$0xff]
        %v279 = vld [vmem:[%s213 + $0x98] sm:$0xff]
        %v280 = vld [vmem:[%s213 + $0xa0] sm:$0xff]
        %v281 = vld [vmem:[%s213 + $0xa8] sm:$0xff]
        %v282 = vld [vmem:[%s213 + $0xb0] sm:$0xff]
        %v283 = vld [vmem:[%s213 + $0xb8] sm:$0xff]
        %v284 = vld [vmem:[%s213 + $0xc0] sm:$0xff]
        %v285 = vld [vmem:[%s213 + $0xc8] sm:$0xff]
        %v286 = vld [vmem:[%s213 + $0xd0] sm:$0xff]
        %v287 = vld [vmem:[%s213 + $0xd8] sm:$0xff]
        %v288 = vld [vmem:[%s213 + $0xe0] sm:$0xff]
        %v289 = vld [vmem:[%s213 + $0xe8] sm:$0xff]
        %v290 = vld [vmem:[%s213 + $0xf0] sm:$0xff]
        %v291 = vld [vmem:[%s213 + $0xf8] sm:$0xff]
        %vm292 = vcmask 523264
        %v293 = vsel %vm292, %v260, 0.0
        %v294 = vsel %vm292, %v262, 0.0
        %v295 = vadd.f32 %v293, %v294
        %v296 = vsel %vm292, %v264, 0.0
        %v297 = vadd.f32 %v295, %v296
        %v298 = vsel %vm292, %v266, 0.0
        %v299 = vadd.f32 %v297, %v298
        %v300 = vsel %vm292, %v268, 0.0
        %v301 = vadd.f32 %v299, %v300
        %v302 = vsel %vm292, %v270, 0.0
        %v303 = vadd.f32 %v301, %v302
        %v304 = vsel %vm292, %v272, 0.0
        %v305 = vadd.f32 %v303, %v304
        %v306 = vsel %vm292, %v274, 0.0
        %v307 = vadd.f32 %v305, %v306
        %v308 = vsel %vm292, %v276, 0.0
        %v309 = vadd.f32 %v307, %v308
        %v310 = vsel %vm292, %v278, 0.0
        %v311 = vadd.f32 %v309, %v310
        %v312 = vsel %vm292, %v280, 0.0
        %v313 = vadd.f32 %v311, %v312
        %v314 = vsel %vm292, %v282, 0.0
        %v315 = vadd.f32 %v313, %v314
        %v316 = vsel %vm292, %v284, 0.0
        %v317 = vadd.f32 %v315, %v316
        %v318 = vsel %vm292, %v286, 0.0
        %v319 = vadd.f32 %v317, %v318
        %v320 = vsel %vm292, %v288, 0.0
        %v321 = vadd.f32 %v319, %v320
        %v322 = vsel %vm292, %v290, 0.0
        %v323 = vadd.f32 %v321, %v322
        %v324 = vsel %vm292, %v261, 0.0
        %v325 = vsel %vm292, %v263, 0.0
        %v326 = vadd.f32 %v324, %v325
        %v327 = vsel %vm292, %v265, 0.0
        %v328 = vadd.f32 %v326, %v327
        %v329 = vsel %vm292, %v267, 0.0
        %v330 = vadd.f32 %v328, %v329
        %v331 = vsel %vm292, %v269, 0.0
        %v332 = vadd.f32 %v330, %v331
        %v333 = vsel %vm292, %v271, 0.0
        %v334 = vadd.f32 %v332, %v333
        %v335 = vsel %vm292, %v273, 0.0
        %v336 = vadd.f32 %v334, %v335
        %v337 = vsel %vm292, %v275, 0.0
        %v338 = vadd.f32 %v336, %v337
        %v339 = vsel %vm292, %v277, 0.0
        %v340 = vadd.f32 %v338, %v339
        %v341 = vsel %vm292, %v279, 0.0
        %v342 = vadd.f32 %v340, %v341
        %v343 = vsel %vm292, %v281, 0.0
        %v344 = vadd.f32 %v342, %v343
        %v345 = vsel %vm292, %v283, 0.0
        %v346 = vadd.f32 %v344, %v345
        %v347 = vsel %vm292, %v285, 0.0
        %v348 = vadd.f32 %v346, %v347
        %v349 = vsel %vm292, %v287, 0.0
        %v350 = vadd.f32 %v348, %v349
        %v351 = vsel %vm292, %v289, 0.0
        %v352 = vadd.f32 %v350, %v351
        %v353 = vsel %vm292, %v291, 0.0
        %v354 = vadd.f32 %v352, %v353
        %v355 = vsel %vm292, %v323, 0.0
        %356 = vadd.xlane.f32.xlu0 %v355
        %v357 = vpop.xlane.xlu0 %356
        %v358 = vsel %vm292, %v354, 0.0
        %359 = vadd.xlane.f32.xlu0 %v358
        %v360 = vpop.xlane.xlu0 %359
        %v361 = vrcp.pop 1024.0
        %v362 = vmul.f32 %v357, %v361
        %v363 = vmul.f32 %v360, %v361
        %v364 = vsub.f32 %v260, %v362
        %v365 = vsub.f32 %v261, %v363
        %v366 = vsub.f32 %v262, %v362
        %v367 = vsub.f32 %v263, %v363
        %v368 = vsub.f32 %v264, %v362
        %v369 = vsub.f32 %v265, %v363
        %v370 = vsub.f32 %v266, %v362
        %v371 = vsub.f32 %v267, %v363
        %v372 = vsub.f32 %v268, %v362
        %v373 = vsub.f32 %v269, %v363
        %v374 = vsub.f32 %v270, %v362
        %v375 = vsub.f32 %v271, %v363
        %v376 = vsub.f32 %v272, %v362
        %v377 = vsub.f32 %v273, %v363
        %v378 = vsub.f32 %v274, %v362
        %v379 = vsub.f32 %v275, %v363
        %v380 = vsub.f32 %v276, %v362
        %v381 = vsub.f32 %v277, %v363
        %v382 = vsub.f32 %v278, %v362
        %v383 = vsub.f32 %v279, %v363
        %v384 = vsub.f32 %v280, %v362
        %v385 = vsub.f32 %v281, %v363
        %v386 = vsub.f32 %v282, %v362
        %v387 = vsub.f32 %v283, %v363
        %v388 = vsub.f32 %v284, %v362
        %v389 = vsub.f32 %v285, %v363
        %v390 = vsub.f32 %v286, %v362
        %v391 = vsub.f32 %v287, %v363
        %v392 = vsub.f32 %v288, %v362
        %v393 = vsub.f32 %v289, %v363
        %v394 = vsub.f32 %v290, %v362
        %v395 = vsub.f32 %v291, %v363
        %v396 = vmul.f32 %v364, %v364
        %v397 = vmul.f32 %v365, %v365
        %v398 = vmul.f32 %v366, %v366
        %v399 = vmul.f32 %v367, %v367
        %v400 = vmul.f32 %v368, %v368
        %v401 = vmul.f32 %v369, %v369
        %v402 = vmul.f32 %v370, %v370
        %v403 = vmul.f32 %v371, %v371
        %v404 = vmul.f32 %v372, %v372
        %v405 = vmul.f32 %v373, %v373
        %v406 = vmul.f32 %v374, %v374
        %v407 = vmul.f32 %v375, %v375
        %v408 = vmul.f32 %v376, %v376
        %v409 = vmul.f32 %v377, %v377
        %v410 = vmul.f32 %v378, %v378
        %v411 = vmul.f32 %v379, %v379
        %v412 = vmul.f32 %v380, %v380
        %v413 = vmul.f32 %v381, %v381
        %v414 = vmul.f32 %v382, %v382
        %v415 = vmul.f32 %v383, %v383
        %v416 = vmul.f32 %v384, %v384
        %v417 = vmul.f32 %v385, %v385
        %v418 = vmul.f32 %v386, %v386
        %v419 = vmul.f32 %v387, %v387
        %v420 = vmul.f32 %v388, %v388
        %v421 = vmul.f32 %v389, %v389
        %v422 = vmul.f32 %v390, %v390
        %v423 = vmul.f32 %v391, %v391
        %v424 = vmul.f32 %v392, %v392
        %v425 = vmul.f32 %v393, %v393
        %v426 = vmul.f32 %v394, %v394
        %v427 = vmul.f32 %v395, %v395
        %v428 = vsel %vm292, %v396, 0.0
        %v429 = vsel %vm292, %v398, 0.0
        %v430 = vadd.f32 %v428, %v429
        %v431 = vsel %vm292, %v400, 0.0
        %v432 = vadd.f32 %v430, %v431
        %v433 = vsel %vm292, %v402, 0.0
        %v434 = vadd.f32 %v432, %v433
        %v435 = vsel %vm292, %v404, 0.0
        %v436 = vadd.f32 %v434, %v435
        %v437 = vsel %vm292, %v406, 0.0
        %v438 = vadd.f32 %v436, %v437
        %v439 = vsel %vm292, %v408, 0.0
        %v440 = vadd.f32 %v438, %v439
        %v441 = vsel %vm292, %v410, 0.0
        %v442 = vadd.f32 %v440, %v441
        %v443 = vsel %vm292, %v412, 0.0
        %v444 = vadd.f32 %v442, %v443
        %v445 = vsel %vm292, %v414, 0.0
        %v446 = vadd.f32 %v444, %v445
        %v447 = vsel %vm292, %v416, 0.0
        %v448 = vadd.f32 %v446, %v447
        %v449 = vsel %vm292, %v418, 0.0
        %v450 = vadd.f32 %v448, %v449
        %v451 = vsel %vm292, %v420, 0.0
        %v452 = vadd.f32 %v450, %v451
        %v453 = vsel %vm292, %v422, 0.0
        %v454 = vadd.f32 %v452, %v453
        %v455 = vsel %vm292, %v424, 0.0
        %v456 = vadd.f32 %v454, %v455
        %v457 = vsel %vm292, %v426, 0.0
        %v458 = vadd.f32 %v456, %v457
        %v459 = vsel %vm292, %v397, 0.0
        %v460 = vsel %vm292, %v399, 0.0
        %v461 = vadd.f32 %v459, %v460
        %v462 = vsel %vm292, %v401, 0.0
        %v463 = vadd.f32 %v461, %v462
        %v464 = vsel %vm292, %v403, 0.0
        %v465 = vadd.f32 %v463, %v464
        %v466 = vsel %vm292, %v405, 0.0
        %v467 = vadd.f32 %v465, %v466
        %v468 = vsel %vm292, %v407, 0.0
        %v469 = vadd.f32 %v467, %v468
        %v470 = vsel %vm292, %v409, 0.0
        %v471 = vadd.f32 %v469, %v470
        %v472 = vsel %vm292, %v411, 0.0
        %v473 = vadd.f32 %v471, %v472
        %v474 = vsel %vm292, %v413, 0.0
        %v475 = vadd.f32 %v473, %v474
        %v476 = vsel %vm292, %v415, 0.0
        %v477 = vadd.f32 %v475, %v476
        %v478 = vsel %vm292, %v417, 0.0
        %v479 = vadd.f32 %v477, %v478
        %v480 = vsel %vm292, %v419, 0.0
        %v481 = vadd.f32 %v479, %v480
        %v482 = vsel %vm292, %v421, 0.0
        %v483 = vadd.f32 %v481, %v482
        %v484 = vsel %vm292, %v423, 0.0
        %v485 = vadd.f32 %v483, %v484
        %v486 = vsel %vm292, %v425, 0.0
        %v487 = vadd.f32 %v485, %v486
        %v488 = vsel %vm292, %v427, 0.0
        %v489 = vadd.f32 %v487, %v488
        %v490 = vsel %vm292, %v458, 0.0
        %491 = vadd.xlane.f32.xlu0 %v490
        %v492 = vpop.xlane.xlu0 %491
        %v493 = vsel %vm292, %v489, 0.0
        %494 = vadd.xlane.f32.xlu0 %v493
        %v495 = vpop.xlane.xlu0 %494
        %v496 = vmul.f32 %v492, %v361
        %v497 = vmul.f32 %v495, %v361
        %v498 = vadd.f32 %v496, 1e-05
        %v499 = vadd.f32 %v497, 1e-05
        %v500 = vrsqrt.pop %v498
        %v501 = vrsqrt.pop %v499
        %v502 = vld [vmem:[%s251] sm:$0xff]
        %v503 = vld [vmem:[%s251 + $0x8] sm:$0xff]
        %v504 = vmul.f32 %v502, %v500
        %v505 = vmul.f32 %v503, %v501
        %v506 = vld [vmem:[%s257] sm:$0xff]
        %v507 = vld [vmem:[%s257 + $0x8] sm:$0xff]
        %509 = vset.pattern.permute.xlu0 0
        %510 = vperm.xlu0 %509, %v504
        %v511 = vpop.permute.xlu0 %510
        %514 = vset.pattern.permute.xlu0 0
        %515 = vperm.xlu0 %514, %v505
        %v516 = vpop.permute.xlu0 %515
        %v518 = vmul.f32 %v364, %v511
        %v519 = vmul.f32 %v365, %v516
        %v520 = vmul.f32 %v366, %v511
        %v521 = vmul.f32 %v367, %v516
        %v522 = vmul.f32 %v368, %v511
        %v523 = vmul.f32 %v369, %v516
        %v524 = vmul.f32 %v370, %v511
        %v525 = vmul.f32 %v371, %v516
        %v526 = vmul.f32 %v372, %v511
        %v527 = vmul.f32 %v373, %v516
        %v528 = vmul.f32 %v374, %v511
        %v529 = vmul.f32 %v375, %v516
        %v530 = vmul.f32 %v376, %v511
        %v531 = vmul.f32 %v377, %v516
        %v532 = vmul.f32 %v378, %v511
        %v533 = vmul.f32 %v379, %v516
        %v534 = vmul.f32 %v380, %v511
        %v535 = vmul.f32 %v381, %v516
        %v536 = vmul.f32 %v382, %v511
        %v537 = vmul.f32 %v383, %v516
        %v538 = vmul.f32 %v384, %v511
        %v539 = vmul.f32 %v385, %v516
        %v540 = vmul.f32 %v386, %v511
        %v541 = vmul.f32 %v387, %v516
        %v542 = vmul.f32 %v388, %v511
        %v543 = vmul.f32 %v389, %v516
        %v544 = vmul.f32 %v390, %v511
        %v545 = vmul.f32 %v391, %v516
        %v546 = vmul.f32 %v392, %v511
        %v547 = vmul.f32 %v393, %v516
        %v548 = vmul.f32 %v394, %v511
        %v549 = vmul.f32 %v395, %v516
        %551 = vset.pattern.permute.xlu0 0
        %552 = vperm.xlu0 %551, %v506
        %v553 = vpop.permute.xlu0 %552
        %556 = vset.pattern.permute.xlu0 0
        %557 = vperm.xlu0 %556, %v507
        %v558 = vpop.permute.xlu0 %557
        %v560 = vadd.f32 %v518, %v553
        %v561 = vadd.f32 %v519, %v558
        %v562 = vadd.f32 %v520, %v553
        %v563 = vadd.f32 %v521, %v558
        %v564 = vadd.f32 %v522, %v553
        %v565 = vadd.f32 %v523, %v558
        %v566 = vadd.f32 %v524, %v553
        %v567 = vadd.f32 %v525, %v558
        %v568 = vadd.f32 %v526, %v553
        %v569 = vadd.f32 %v527, %v558
        %v570 = vadd.f32 %v528, %v553
        %v571 = vadd.f32 %v529, %v558
        %v572 = vadd.f32 %v530, %v553
        %v573 = vadd.f32 %v531, %v558
        %v574 = vadd.f32 %v532, %v553
        %v575 = vadd.f32 %v533, %v558
        %v576 = vadd.f32 %v534, %v553
        %v577 = vadd.f32 %v535, %v558
        %v578 = vadd.f32 %v536, %v553
        %v579 = vadd.f32 %v537, %v558
        %v580 = vadd.f32 %v538, %v553
        %v581 = vadd.f32 %v539, %v558
        %v582 = vadd.f32 %v540, %v553
        %v583 = vadd.f32 %v541, %v558
        %v584 = vadd.f32 %v542, %v553
        %v585 = vadd.f32 %v543, %v558
        %v586 = vadd.f32 %v544, %v553
        %v587 = vadd.f32 %v545, %v558
        %v588 = vadd.f32 %v546, %v553
        %v589 = vadd.f32 %v547, %v558
        %v590 = vadd.f32 %v548, %v553
        %v591 = vadd.f32 %v549, %v558
        %592 = vst.msk [vmem:[%s245] sm:$0xff] %vm292, %v560
        %593 = vst.msk [vmem:[%s245 + $0x8] sm:$0xff] %vm292, %v561
        %594 = vst.msk [vmem:[%s245 + $0x10] sm:$0xff] %vm292, %v562
        %595 = vst.msk [vmem:[%s245 + $0x18] sm:$0xff] %vm292, %v563
        %596 = vst.msk [vmem:[%s245 + $0x20] sm:$0xff] %vm292, %v564
        %597 = vst.msk [vmem:[%s245 + $0x28] sm:$0xff] %vm292, %v565
        %598 = vst.msk [vmem:[%s245 + $0x30] sm:$0xff] %vm292, %v566
        %599 = vst.msk [vmem:[%s245 + $0x38] sm:$0xff] %vm292, %v567
        %600 = vst.msk [vmem:[%s245 + $0x40] sm:$0xff] %vm292, %v568
        %601 = vst.msk [vmem:[%s245 + $0x48] sm:$0xff] %vm292, %v569
        %602 = vst.msk [vmem:[%s245 + $0x50] sm:$0xff] %vm292, %v570
        %603 = vst.msk [vmem:[%s245 + $0x58] sm:$0xff] %vm292, %v571
        %604 = vst.msk [vmem:[%s245 + $0x60] sm:$0xff] %vm292, %v572
        %605 = vst.msk [vmem:[%s245 + $0x68] sm:$0xff] %vm292, %v573
        %606 = vst.msk [vmem:[%s245 + $0x70] sm:$0xff] %vm292, %v574
        %607 = vst.msk [vmem:[%s245 + $0x78] sm:$0xff] %vm292, %v575
        %608 = vst.msk [vmem:[%s245 + $0x80] sm:$0xff] %vm292, %v576
        %609 = vst.msk [vmem:[%s245 + $0x88] sm:$0xff] %vm292, %v577
        %610 = vst.msk [vmem:[%s245 + $0x90] sm:$0xff] %vm292, %v578
        %611 = vst.msk [vmem:[%s245 + $0x98] sm:$0xff] %vm292, %v579
        %612 = vst.msk [vmem:[%s245 + $0xa0] sm:$0xff] %vm292, %v580
        %613 = vst.msk [vmem:[%s245 + $0xa8] sm:$0xff] %vm292, %v581
        %614 = vst.msk [vmem:[%s245 + $0xb0] sm:$0xff] %vm292, %v582
        %615 = vst.msk [vmem:[%s245 + $0xb8] sm:$0xff] %vm292, %v583
        %616 = vst.msk [vmem:[%s245 + $0xc0] sm:$0xff] %vm292, %v584
        %617 = vst.msk [vmem:[%s245 + $0xc8] sm:$0xff] %vm292, %v585
        %618 = vst.msk [vmem:[%s245 + $0xd0] sm:$0xff] %vm292, %v586
        %619 = vst.msk [vmem:[%s245 + $0xd8] sm:$0xff] %vm292, %v587
        %620 = vst.msk [vmem:[%s245 + $0xe0] sm:$0xff] %vm292, %v588
        %621 = vst.msk [vmem:[%s245 + $0xe8] sm:$0xff] %vm292, %v589
        %622 = vst.msk [vmem:[%s245 + $0xf0] sm:$0xff] %vm292, %v590
        %623 = vst.msk [vmem:[%s245 + $0xf8] sm:$0xff] %vm292, %v591
        %s624 = sand.u32 %s106, 1
        %s625 = scalar_lea.sflag [#allocation4], %s624
        %s626 = sand.u32 %s106, 1
        %s627 = smul.addr %s626, 256
        %s628 = scalar_lea.vmem [#allocation5], %s627
        // Predicated region
        $region37: #{tpu_custom_call.1} parent=31 // pred_check
          %p629 = pneg %p116
        $region38: #{tpu_custom_call.1} parent=31 // pred_check_branch
          %631 = sbr.rel (%p629) target = $region40
        $region39: #{tpu_custom_call.1} parent=31 // pred_region
          #allocation9 [shape = 'u32[6]{0}', space=smem, size = 0x18, scoped, tag = 'DMA stride descriptor']
          %s632 = smul.u32 2, %s20
          %s634 = ssub.s32 4096, 4096
          %635 = vsyncadd %s625, %s634
          %s636 = smul.addr %s632, 128
          %s637 = scalar_lea.hbm %s3, %s636
          %s639 = sshll.u32 1, 14
          %s640 = sxor.u32 4294967295, %s639
          %s643 = sshll.u32 7, 18
          %s644 = sxor.u32 4294967295, %s643
          %s645 = sand.u32 0, %s644
          %s647 = sor.u32 %s645, 0
          %s648 = sshll.u32 %s628, 4
          %s649 = int_to_ptr.vmem [resolvable:$true] %s648
          %655 = sst [smem:[#allocation9]] 256
          %s656 = scalar_lea.smem [#allocation9], 1
          %657 = sst [smem:[%s656]] 512
          %s658 = scalar_lea.smem [#allocation9], 2
          %659 = sst [smem:[%s658]] 2
          %s660 = scalar_lea.smem [#allocation9], 3
          %661 = sst [smem:[%s660]] 128
          %s662 = scalar_lea.smem [#allocation9], 4
          %663 = sst [smem:[%s662]] 128
          %s664 = scalar_lea.smem [#allocation9], 5
          %665 = sst [smem:[%s664]] 8
          %667 = dma.general %s649, 4096, %s637, %s625, 131072, [#allocation9], %s647, 0
        $region40: #{tpu_custom_call.1} parent=31 // pred_fallthru
          _
      $region32: #{tpu_custom_call.1} parent=5 // pred_fallthru
        _
      %p668 = scmp.le.s32.totalorder 2, %s15
      // Predicated region
      $region41: #{tpu_custom_call.1} parent=5 // pred_check
        %p669 = pneg %p668
      $region42: #{tpu_custom_call.1} parent=5 // pred_check_branch
        %671 = sbr.rel (%p669) target = $region44
      $region43: #{tpu_custom_call.1} parent=5 // pred_region
        %s672 = ssub.s32 %s15, 2
        // Predicated region
        $region45: #{tpu_custom_call.1} parent=43 // pred_check
          %p673 = pneg %p122
        $region46: #{tpu_custom_call.1} parent=43 // pred_check_branch
          %675 = sbr.rel (%p673) target = $region48
        $region47: #{tpu_custom_call.1} parent=43 // pred_region
          %s676 = sand.u32 %s107, 1
          %s677 = scalar_lea.sflag [#allocation4], %s676
          %s678 = sand.u32 %s107, 1
          %s679 = smul.addr %s678, 256
          %s680 = scalar_lea.vmem [#allocation5], %s679
          %681 = dma.done %s677, 4096
        $region48: #{tpu_custom_call.1} parent=43 // pred_fallthru
          _
      $region44: #{tpu_custom_call.1} parent=5 // pred_fallthru
        _
    $region6: #{tpu_custom_call.1} parent=1 // loop_footer
      %s19 = sadd.s32 1, %s15
    $region7: #{tpu_custom_call.1} parent=1 // loop_footer_branch
      %14 = sbr.rel target = $region3
    $region8: #{tpu_custom_call.1} parent=1 // loop_exit
      _
    %682 = vsyncpa [#allocation3], 1
    %s683 = scalar_lea.sflag [#allocation3], 1
    %684 = vsyncpa %s683, 1
    %685 = vsyncpa [#allocation4], 1
    %s686 = scalar_lea.sflag [#allocation4], 1
    %687 = vsyncpa %s686, 1

</llo_original>
